<compile_context>
chip_gen: v7x
topology: tpu7x:2x2x1
jax: 0.10.0
libtpu: 0.0.40
codegen_flags: <defaults>
</compile_context>

<pallas_src>
import functools

import jax
import jax.numpy as jnp
from jax.experimental import pallas as pl
from jax.experimental.pallas import tpu as pltpu

HIDDEN = 128
BN_EPS = 1e-5
_OFF = 8                      # interior rows start 8-aligned inside the scratch


# ---------------------------------------------------------------------------
# Fused kernel: n_layers x (conv1d k=3 pad=1 -> ReLU -> folded BN [eval]).
# ---------------------------------------------------------------------------
def _fused_convblocks_kernel(x_ref, w_ref, b_ref, scale_ref, shift_ref, o_ref,
                             buf_a, buf_b, *, L, C, n_layers, apply_sigmoid):
    # x_ref:     (L, C) f32            one sample, NLC, channels padded to C
    # w_ref:     (n_layers*3, C, C) bf16   row-block l*3+t = tap-t weight, layer l
    # b_ref:     (n_layers, 1, C) f32      conv bias
    # scale_ref: (n_layers, 1, C) f32      folded BN scale = gamma/sqrt(var+eps)
    # shift_ref: (n_layers, 1, C) f32      folded BN shift = beta - mean*scale
    # o_ref:     (L, C) f32
    # buf_a/b:   (Lp, C) bf16 VMEM ping-pong; interior rows [_OFF, _OFF+L),
    #            zero halo rows at _OFF-1 and _OFF+L  (=> padding=1 in-kernel).
    bufs = (buf_a, buf_b)

    # Only the two halo rows per buffer need zeroing (interiors are fully
    # rewritten every layer).  Done unconditionally each step (4 single-row
    # stores, ~free) instead of gating on program_id==0: with "parallel"
    # megacore sharding the second TensorCore never sees step 0 and its
    # scratch would otherwise stay uninitialized.
    zrow = jnp.zeros((1, C), jnp.bfloat16)
    for buf in bufs:
        buf[pl.ds(_OFF - 1, 1), :] = zrow
        buf[pl.ds(_OFF + L, 1), :] = zrow

    # Stage this sample into buffer A's interior as the bf16 MXU operand.
    buf_a[pl.ds(_OFF, L), :] = x_ref[...].astype(jnp.bfloat16)

    cur = 0
    for layer in range(n_layers):
        src = bufs[cur]
        # Conv1d(k=3, padding=1) as three accumulating K=C dots on the MXU
        # (bf16 operands, f32 accumulation).  No concatenation: avoids copying
        # 3x the activation through the vector-store slot every layer.
        acc = jnp.dot(src[pl.ds(_OFF, L), :], w_ref[layer * 3 + 1],
                      preferred_element_type=jnp.float32)
        acc += jnp.dot(src[pl.ds(_OFF - 1, L), :], w_ref[layer * 3 + 0],
                       preferred_element_type=jnp.float32)
        acc += jnp.dot(src[pl.ds(_OFF + 1, L), :], w_ref[layer * 3 + 2],
                       preferred_element_type=jnp.float32)

        # f32 epilogue: bias -> ReLU -> folded (eval-mode) BatchNorm.
        acc = jnp.maximum(acc + b_ref[layer], 0.0)
        acc = acc * scale_ref[layer] + shift_ref[layer]

        if layer == n_layers - 1:
            if apply_sigmoid:
                acc = pl.reciprocal(1.0 + jnp.exp(-acc))   # exp + rcp on the EUP
            o_ref[...] = acc.astype(o_ref.dtype)
        else:
            bufs[1 - cur][pl.ds(_OFF, L), :] = acc.astype(jnp.bfloat16)
            cur = 1 - cur


def fused_convblocks_pallas(x_ncl, stacked_params, *, apply_sigmoid=False):
    """Fused forward.  x_ncl: (N, C_in, L) f32 (PyTorch NCL) -> (N, L, C) f32 (NLC).

    Output is channels-last to avoid an extra full HBM read+write; transpose
    with (0, 2, 1) downstream only if strict NCL is required.
    """
    w_all, b_all, scale_all, shift_all = stacked_params
    n_layers = w_all.shape[0] // 3
    C = w_all.shape[-1]
    N, c_in0, L = x_ncl.shape

    # NCL -> NLC so channels map onto the 128-lane axis; zero-pad C_in up to C
    # (layer-0 weights are zero-padded identically, so the math is unchanged).
    x_nlc = jnp.transpose(x_ncl, (0, 2, 1))
    if c_in0 < C:
        x_nlc = jnp.pad(x_nlc, ((0, 0), (0, 0), (0, C - c_in0)))

    Lp = ((_OFF + L + 1 + 7) // 8) * 8          # scratch rows, 8-aligned

    kernel = functools.partial(
        _fused_convblocks_kernel, L=L, C=C, n_layers=n_layers,
        apply_sigmoid=apply_sigmoid)

    # Explicit VMEM budget so the scoped default never silently caps the tile:
    # double-buffered in/out blocks + bf16 weights + bf16 ping-pong scratch.
    est = (4 * L * C * 4                 # input + output blocks, double-buffered
           + 2 * w_all.size * 2          # bf16 weights (headroom for dbl-buf)
           + 2 * Lp * C * 2              # bf16 activation ping-pong
           + 2 * 3 * b_all.size * 4)     # bias / scale / shift
    vmem_limit = int(min(max(2 * est, 32 * 1024 * 1024), 48 * 1024 * 1024))

    out_nlc = pl.pallas_call(
        kernel,
        out_shape=jax.ShapeDtypeStruct((N, L, C), x_ncl.dtype),
        grid_spec=pltpu.PrefetchScalarGridSpec(
            num_scalar_prefetch=0,
            grid=(N,),                              # one sample per grid step
            in_specs=[
                pl.BlockSpec((None, L, C), lambda g: (g, 0, 0)),
                pl.BlockSpec((3 * n_layers, C, C), lambda g: (0, 0, 0)),
                pl.BlockSpec((n_layers, 1, C), lambda g: (0, 0, 0)),
                pl.BlockSpec((n_layers, 1, C), lambda g: (0, 0, 0)),
                pl.BlockSpec((n_layers, 1, C), lambda g: (0, 0, 0)),
            ],
            out_specs=pl.BlockSpec((None, L, C), lambda g: (g, 0, 0)),
            scratch_shapes=[
                pltpu.VMEM((Lp, C), jnp.bfloat16),
                pltpu.VMEM((Lp, C), jnp.bfloat16),
            ],
        ),
        compiler_params=pltpu.CompilerParams(
            dimension_semantics=("parallel",),
            vmem_limit_bytes=vmem_limit),
    )(x_nlc, w_all, b_all, scale_all, shift_all)

    return out_nlc


# ---------------------------------------------------------------------------
# Parameter construction (deterministic, synthetic) and stacking for the kernel.
# ---------------------------------------------------------------------------
def make_block_params(key, c_in, c_out):
    kw, kb, kg, kbeta, km, kv = jax.random.split(key, 6)
    # PyTorch Conv1d weight layout (C_out, C_in, K=3) -> (K=3, C_in, C_out).
    w_torch = 0.1 * jax.random.normal(kw, (c_out, c_in, 3), jnp.float32)
    w3 = jnp.transpose(w_torch, (2, 1, 0))
    b = 0.1 * jax.random.normal(kb, (1, c_out), jnp.float32)
    # Eval-mode BatchNorm1d params / running stats, folded into scale & shift.
    gamma = 1.0 + 0.1 * jax.random.normal(kg, (1, c_out), jnp.float32)
    beta = 0.1 * jax.random.normal(kbeta, (1, c_out), jnp.float32)
    running_mean = 0.1 * jax.random.normal(km, (1, c_out), jnp.float32)
    running_var = jnp.abs(jax.random.normal(kv, (1, c_out), jnp.float32)) + 0.5
    scale = gamma / jnp.sqrt(running_var + BN_EPS)
    shift = beta - running_mean * scale
    return w3, b, scale, shift


def stack_params(params, C):
    """Stack per-block params for the kernel (bf16 weights, C_in zero-padded)."""
    w_list, b_list, s_list, t_list = [], [], [], []
    for (w3, b, scale, shift) in params:
        c_in = w3.shape[1]
        if c_in < C:
            w3 = jnp.pad(w3, ((0, 0), (0, C - c_in), (0, 0)))
        w_list.append(w3)                                   # (3, C, C)
        b_list.append(b)
        s_list.append(scale)
        t_list.append(shift)
    w_all = jnp.concatenate(w_list, axis=0).astype(jnp.bfloat16)  # (3*n, C, C)
    return (w_all, jnp.stack(b_list), jnp.stack(s_list), jnp.stack(t_list))


# Pure-JAX reference (NLC).  match_kernel_precision=True emulates the kernel's
# bf16 matmul operands with f32 accumulation and f32 ReLU/BN epilogue.
def forward_ref(x_ncl, params, apply_sigmoid=False, match_kernel_precision=True):
    x = jnp.transpose(x_ncl, (0, 2, 1))
    n_blocks = len(params)
    for i, (w3, b, scale, shift) in enumerate(params):
        L = x.shape[1]
        if match_kernel_precision:
            xk, wk = x.astype(jnp.bfloat16), w3.astype(jnp.bfloat16)
        else:
            xk, wk = x, w3
        xp = jnp.pad(xk, ((0, 0), (1, 1), (0, 0)))
        y = jnp.dot(xp[:, 1:L + 1], wk[1], preferred_element_type=jnp.float32)
        y = y + jnp.dot(xp[:, 0:L], wk[0], preferred_element_type=jnp.float32)
        y = y + jnp.dot(xp[:, 2:L + 2], wk[2], preferred_element_type=jnp.float32)
        y = jnp.maximum(y + b, 0.0)
        y = y * scale + shift
        if apply_sigmoid and i == n_blocks - 1:
            y = jax.nn.sigmoid(y)
        x = y
    return x


if __name__ == "__main__":
    key = jax.random.PRNGKey(0)
    k_in, k_params = jax.random.split(key)

    # Small shapes consistent with the module: batch=2, feature_dim=4, length=16.
    N, FEATURE_DIM, L = 2, 4, 16
    x = jax.random.normal(k_in, (N, FEATURE_DIM, L), jnp.float32)   # PyTorch NCL

    # (a) a single ConvBlock exactly as in the spec:
    #     Conv1d(4 -> 128, k=3, padding=1) -> ReLU -> BatchNorm1d (eval).
    single_params = [make_block_params(k_params, FEATURE_DIM, HIDDEN)]
    out1 = jax.block_until_ready(
        fused_convblocks_pallas(x, stack_params(single_params, HIDDEN)))
    ref1 = forward_ref(x, single_params)
    assert out1.shape == (N, L, HIDDEN), out1.shape
    assert jnp.allclose(out1, ref1, atol=2e-3, rtol=2e-3), "single-block mismatch"

    # (b) fused stack of 5 ConvBlocks (4->128, then 4x 128->128), one pallas_call.
    block_keys = jax.random.split(k_params, 5)
    params = [make_block_params(block_keys[0], FEATURE_DIM, HIDDEN)]
    params += [make_block_params(block_keys[i], HIDDEN, HIDDEN) for i in range(1, 5)]
    out5 = jax.block_until_ready(
        fused_convblocks_pallas(x, stack_params(params, HIDDEN)))
    ref5 = forward_ref(x, params)
    assert out5.shape == (N, L, HIDDEN), out5.shape
    assert jnp.allclose(out5, ref5, atol=2e-3, rtol=2e-3), "5-block stack mismatch"

    print("KERNEL_OK")
</pallas_src>

<mosaic_0001>
module attributes {stable_mosaic.version = 11 : i64} {
  func.func @_fused_convblocks_kernel(%arg0: i32, %arg1: memref<1x16x128xf32, #tpu.memory_space<vmem>>, %arg2: memref<3x128x128xbf16, #tpu.memory_space<vmem>>, %arg3: memref<1x1x128xf32, #tpu.memory_space<vmem>>, %arg4: memref<1x1x128xf32, #tpu.memory_space<vmem>>, %arg5: memref<1x1x128xf32, #tpu.memory_space<vmem>>, %arg6: memref<1x16x128xf32, #tpu.memory_space<vmem>>, %arg7: memref<32x128xbf16, #tpu.memory_space<vmem>>, %arg8: memref<32x128xbf16, #tpu.memory_space<vmem>>) attributes {dimension_semantics = [#tpu.dimension_semantics<parallel>], iteration_bounds = array<i64: 2>, scalar_prefetch = 0 : i64, scratch_operands = 2 : i64, tpu.core_type = #tpu.core_type<tc>, window_params = [{transform_indices = @transform_0, window_bounds = array<i64: 1, 16, 128>}, {pipeline_mode = #tpu.pipeline_mode<synchronous>, transform_indices = @transform_1, window_bounds = array<i64: 3, 128, 128>}, {pipeline_mode = #tpu.pipeline_mode<synchronous>, transform_indices = @transform_2, window_bounds = array<i64: 1, 1, 128>}, {pipeline_mode = #tpu.pipeline_mode<synchronous>, transform_indices = @transform_3, window_bounds = array<i64: 1, 1, 128>}, {pipeline_mode = #tpu.pipeline_mode<synchronous>, transform_indices = @transform_4, window_bounds = array<i64: 1, 1, 128>}, {transform_indices = @transform_5, window_bounds = array<i64: 1, 16, 128>}]} {
    %cst = arith.constant 0.000000e+00 : bf16
    %0 = vector.broadcast %cst : bf16 to vector<1x128xbf16>
    %c7 = arith.constant 7 : index
    %c0 = arith.constant 0 : index
    %1 = vector.load %arg7[%c7, %c0] : memref<32x128xbf16, #tpu.memory_space<vmem>>, vector<1x128xbf16>
    tpu.vector_store %arg7[%c7, %c0], %0 {strides = array<i32>} : memref<32x128xbf16, #tpu.memory_space<vmem>>, vector<1x128xbf16>,
    %c24 = arith.constant 24 : index
    %c0_0 = arith.constant 0 : index
    %2 = vector.load %arg7[%c24, %c0_0] : memref<32x128xbf16, #tpu.memory_space<vmem>>, vector<1x128xbf16>
    tpu.vector_store %arg7[%c24, %c0_0], %0 {strides = array<i32>} : memref<32x128xbf16, #tpu.memory_space<vmem>>, vector<1x128xbf16>,
    %c7_1 = arith.constant 7 : index
    %c0_2 = arith.constant 0 : index
    %3 = vector.load %arg8[%c7_1, %c0_2] : memref<32x128xbf16, #tpu.memory_space<vmem>>, vector<1x128xbf16>
    tpu.vector_store %arg8[%c7_1, %c0_2], %0 {strides = array<i32>} : memref<32x128xbf16, #tpu.memory_space<vmem>>, vector<1x128xbf16>,
    %c24_3 = arith.constant 24 : index
    %c0_4 = arith.constant 0 : index
    %4 = vector.load %arg8[%c24_3, %c0_4] : memref<32x128xbf16, #tpu.memory_space<vmem>>, vector<1x128xbf16>
    tpu.vector_store %arg8[%c24_3, %c0_4], %0 {strides = array<i32>} : memref<32x128xbf16, #tpu.memory_space<vmem>>, vector<1x128xbf16>,
    %c0_5 = arith.constant 0 : index
    %c0_6 = arith.constant 0 : index
    %c0_7 = arith.constant 0 : index
    %5 = vector.load %arg1[%c0_5, %c0_6, %c0_7] : memref<1x16x128xf32, #tpu.memory_space<vmem>>, vector<1x16x128xf32>
    %6 = vector.shape_cast %5 : vector<1x16x128xf32> to vector<16x128xf32>
    %7 = arith.truncf %6 : vector<16x128xf32> to vector<16x128xbf16>
    %c8 = arith.constant 8 : index
    %c0_8 = arith.constant 0 : index
    %8 = vector.load %arg7[%c8, %c0_8] : memref<32x128xbf16, #tpu.memory_space<vmem>>, vector<16x128xbf16>
    tpu.vector_store %arg7[%c8, %c0_8], %7 {strides = array<i32>} : memref<32x128xbf16, #tpu.memory_space<vmem>>, vector<16x128xbf16>,
    %c8_9 = arith.constant 8 : index
    %c0_10 = arith.constant 0 : index
    %9 = vector.load %arg7[%c8_9, %c0_10] : memref<32x128xbf16, #tpu.memory_space<vmem>>, vector<16x128xbf16>
    %c1 = arith.constant 1 : index
    %c0_11 = arith.constant 0 : index
    %c0_12 = arith.constant 0 : index
    %10 = vector.load %arg2[%c1, %c0_11, %c0_12] : memref<3x128x128xbf16, #tpu.memory_space<vmem>>, vector<1x128x128xbf16>
    %11 = vector.shape_cast %10 : vector<1x128x128xbf16> to vector<128x128xbf16>
    %cst_13 = arith.constant dense<0.000000e+00> : vector<16x128xf32>
    %12 = tpu.matmul %9, %11, %cst_13 {dimension_numbers = #tpu.dot_dimension_numbers<[1], [0], [0], [1], [0, 0, 1, 1], [], []>} : vector<16x128xbf16>, vector<128x128xbf16>, vector<16x128xf32> -> vector<16x128xf32>
    %c7_14 = arith.constant 7 : index
    %c0_15 = arith.constant 0 : index
    %13 = vector.load %arg7[%c7_14, %c0_15] : memref<32x128xbf16, #tpu.memory_space<vmem>>, vector<16x128xbf16>
    %c0_16 = arith.constant 0 : index
    %c0_17 = arith.constant 0 : index
    %c0_18 = arith.constant 0 : index
    %14 = vector.load %arg2[%c0_16, %c0_17, %c0_18] : memref<3x128x128xbf16, #tpu.memory_space<vmem>>, vector<1x128x128xbf16>
    %15 = vector.shape_cast %14 : vector<1x128x128xbf16> to vector<128x128xbf16>
    %cst_19 = arith.constant dense<0.000000e+00> : vector<16x128xf32>
    %16 = tpu.matmul %13, %15, %cst_19 {dimension_numbers = #tpu.dot_dimension_numbers<[1], [0], [0], [1], [0, 0, 1, 1], [], []>} : vector<16x128xbf16>, vector<128x128xbf16>, vector<16x128xf32> -> vector<16x128xf32>
    %17 = arith.addf %12, %16 : vector<16x128xf32>
    %c9 = arith.constant 9 : index
    %c0_20 = arith.constant 0 : index
    %18 = vector.load %arg7[%c9, %c0_20] : memref<32x128xbf16, #tpu.memory_space<vmem>>, vector<16x128xbf16>
    %c2 = arith.constant 2 : index
    %c0_21 = arith.constant 0 : index
    %c0_22 = arith.constant 0 : index
    %19 = vector.load %arg2[%c2, %c0_21, %c0_22] : memref<3x128x128xbf16, #tpu.memory_space<vmem>>, vector<1x128x128xbf16>
    %20 = vector.shape_cast %19 : vector<1x128x128xbf16> to vector<128x128xbf16>
    %cst_23 = arith.constant dense<0.000000e+00> : vector<16x128xf32>
    %21 = tpu.matmul %18, %20, %cst_23 {dimension_numbers = #tpu.dot_dimension_numbers<[1], [0], [0], [1], [0, 0, 1, 1], [], []>} : vector<16x128xbf16>, vector<128x128xbf16>, vector<16x128xf32> -> vector<16x128xf32>
    %22 = arith.addf %17, %21 : vector<16x128xf32>
    %c0_24 = arith.constant 0 : index
    %c0_25 = arith.constant 0 : index
    %c0_26 = arith.constant 0 : index
    %23 = vector.load %arg3[%c0_24, %c0_25, %c0_26] : memref<1x1x128xf32, #tpu.memory_space<vmem>>, vector<1x1x128xf32>
    %24 = vector.shape_cast %23 : vector<1x1x128xf32> to vector<1x128xf32>
    %25 = vector.broadcast %24 : vector<1x128xf32> to vector<16x128xf32>
    %26 = arith.addf %22, %25 : vector<16x128xf32>
    %cst_27 = arith.constant 0.000000e+00 : f32
    %27 = vector.broadcast %cst_27 : f32 to vector<16x128xf32>
    %28 = arith.maximumf %26, %27 : vector<16x128xf32>
    %c0_28 = arith.constant 0 : index
    %c0_29 = arith.constant 0 : index
    %c0_30 = arith.constant 0 : index
    %29 = vector.load %arg4[%c0_28, %c0_29, %c0_30] : memref<1x1x128xf32, #tpu.memory_space<vmem>>, vector<1x1x128xf32>
    %30 = vector.shape_cast %29 : vector<1x1x128xf32> to vector<1x128xf32>
    %31 = vector.broadcast %30 : vector<1x128xf32> to vector<16x128xf32>
    %32 = arith.mulf %28, %31 : vector<16x128xf32>
    %c0_31 = arith.constant 0 : index
    %c0_32 = arith.constant 0 : index
    %c0_33 = arith.constant 0 : index
    %33 = vector.load %arg5[%c0_31, %c0_32, %c0_33] : memref<1x1x128xf32, #tpu.memory_space<vmem>>, vector<1x1x128xf32>
    %34 = vector.shape_cast %33 : vector<1x1x128xf32> to vector<1x128xf32>
    %35 = vector.broadcast %34 : vector<1x128xf32> to vector<16x128xf32>
    %36 = arith.addf %32, %35 : vector<16x128xf32>
    %c0_34 = arith.constant 0 : index
    %c0_35 = arith.constant 0 : index
    %c0_36 = arith.constant 0 : index
    %37 = vector.load %arg6[%c0_34, %c0_35, %c0_36] : memref<1x16x128xf32, #tpu.memory_space<vmem>>, vector<1x16x128xf32>
    %38 = vector.shape_cast %37 : vector<1x16x128xf32> to vector<16x128xf32>
    %39 = vector.shape_cast %36 : vector<16x128xf32> to vector<1x16x128xf32>
    tpu.vector_store %arg6[%c0_34, %c0_35, %c0_36], %39 {strides = array<i32>} : memref<1x16x128xf32, #tpu.memory_space<vmem>>, vector<1x16x128xf32>,
    return
  }
  func.func @transform_0(%arg0: i32) -> (i32, i32, i32) {
    %c0_i32 = arith.constant 0 : i32
    %c0_i32_0 = arith.constant 0 : i32
    %c0_i32_1 = arith.constant 0 : i32
    return %arg0, %c0_i32, %c0_i32_0 : i32, i32, i32
  }
  func.func @transform_1(%arg0: i32) -> (i32, i32, i32) {
    %c0_i32 = arith.constant 0 : i32
    %c0_i32_0 = arith.constant 0 : i32
    %c0_i32_1 = arith.constant 0 : i32
    %c0_i32_2 = arith.constant 0 : i32
    return %c0_i32, %c0_i32_0, %c0_i32_1 : i32, i32, i32
  }
  func.func @transform_2(%arg0: i32) -> (i32, i32, i32) {
    %c0_i32 = arith.constant 0 : i32
    %c0_i32_0 = arith.constant 0 : i32
    %c0_i32_1 = arith.constant 0 : i32
    %c0_i32_2 = arith.constant 0 : i32
    return %c0_i32, %c0_i32_0, %c0_i32_1 : i32, i32, i32
  }
  func.func @transform_3(%arg0: i32) -> (i32, i32, i32) {
    %c0_i32 = arith.constant 0 : i32
    %c0_i32_0 = arith.constant 0 : i32
    %c0_i32_1 = arith.constant 0 : i32
    %c0_i32_2 = arith.constant 0 : i32
    return %c0_i32, %c0_i32_0, %c0_i32_1 : i32, i32, i32
  }
  func.func @transform_4(%arg0: i32) -> (i32, i32, i32) {
    %c0_i32 = arith.constant 0 : i32
    %c0_i32_0 = arith.constant 0 : i32
    %c0_i32_1 = arith.constant 0 : i32
    %c0_i32_2 = arith.constant 0 : i32
    return %c0_i32, %c0_i32_0, %c0_i32_1 : i32, i32, i32
  }
  func.func @transform_5(%arg0: i32) -> (i32, i32, i32) {
    %c0_i32 = arith.constant 0 : i32
    %c0_i32_0 = arith.constant 0 : i32
    %c0_i32_1 = arith.constant 0 : i32
    return %arg0, %c0_i32, %c0_i32_0 : i32, i32, i32
  }
}

</mosaic_0001>

<llo_original>
// kernel: tpu_custom_call.1
$region0: #{tpu_custom_call.1}
  #allocation0 [shape = 'u32[]', space=smem, size = 0x4, offset = 0x4, fixed_abs, tag = 'smem constant byte address 0x4 - core index']
  #allocation1 [shape = 'u32[144,128]{1,0:T(1,128)}', space=vmem, size = 0x12000, scoped, tag = 'internal scratch']
  #allocation2 [shape = 'bf16[32,128]{1,0:T(16,128)(2,1)}', space=vmem, size = 0x2000, scoped, tag = 'scratch operand']
  #allocation3 [shape = 'bf16[32,128]{1,0:T(16,128)(2,1)}', space=vmem, size = 0x2000, scoped, tag = 'scratch operand']
  %s0 = inlined_call_operand.hbm [shape: f32[2,16,128], index: 0, kind: input, shape index: {}]
  %s1 = inlined_call_operand.hbm [shape: bf16[3,128,128], index: 1, kind: input, shape index: {}]
  %s2 = inlined_call_operand.vmem [shape: f32[1,1,128], index: 2, kind: input, shape index: {}]
  %s3 = inlined_call_operand.vmem [shape: f32[1,1,128], index: 3, kind: input, shape index: {}]
  %s4 = inlined_call_operand.vmem [shape: f32[1,1,128], index: 4, kind: input, shape index: {}]
  %s5 = inlined_call_operand.hbm [shape: f32[2,16,128], index: 5, kind: output, shape index: {}]
  %s6 = sld [smem:[#allocation0]]
  $region61: #{tpu_custom_call.1} parent=0
    _
  %s8 = ssub.s32 1, %s6
  %s9 = scalar_select 0, %s8, %s6
  $region1: #{tpu_custom_call.1} parent=0
    #allocation4 [shape = 'u8[16384]{0}', space=vmem, size = 0x4000, scoped, tag = 'input window, operand 0']
    #allocation5 [shape = 's32[2]{0}', space=sflag, size = 0x8, scoped, tag = 'scoped memory for tpu_custom_call.1']
    #allocation6 [shape = 's32[2]{0}', space=sflag, size = 0x8, scoped, tag = 'scoped memory for tpu_custom_call.1']
    #allocation7 [shape = 'u8[98304]{0}', space=vmem, size = 0x18000, scoped, tag = 'input window, operand 1, single buffered']
    #allocation8 [shape = 's32[1]{0}', space=sflag, size = 0x4, scoped, tag = 'scoped memory for tpu_custom_call.1']
    #allocation9 [shape = 'u8[16384]{0}', space=vmem, size = 0x4000, scoped, tag = 'output window, operand 0']
    %10 = vsyncpa [#allocation5], 0
    %s11 = scalar_lea.sflag [#allocation5], 1
    %12 = vsyncpa %s11, 0
    %13 = vsyncpa [#allocation8], 0
    %14 = vsyncpa [#allocation6], 0
    %s15 = scalar_lea.sflag [#allocation6], 1
    %16 = vsyncpa %s15, 0
    loop: start=0, step=1, limit=4
    $region2: #{tpu_custom_call.1} parent=1 // loop_pre_header
      _
    $region3: #{tpu_custom_call.1} parent=1 // loop_header
      %s18 = sphi 0, %s22
      %p19 = scmp.ge.s32.totalorder %s18, 4
      %s28 = sphi 0, %s30
      %s31 = sphi 0, %s28
      %s32 = sphi 0, %s31
      %s48 = sphi 0, %s32
      %s52 = sphi 0, %s52
      %s54 = sphi 0, %s52
      %s55 = sphi 0, %s54
      %s69 = sphi 0, %s55
      %s73 = sphi 0, %s73
      %s75 = sphi 0, %s73
      %s76 = sphi 0, %s75
      %s90 = sphi 0, %s76
      %s94 = sphi 0, %s94
      %s96 = sphi 0, %s94
      %s97 = sphi 0, %s96
      %s111 = sphi 0, %s97
      %s115 = sphi 0, %s115
      %s117 = sphi 0, %s115
      %s118 = sphi 0, %s117
      %s132 = sphi 0, %s118
      %s138 = sphi 0, %s140
      %s141 = sphi 0, %s138
      %s142 = sphi 0, %s141
      %s158 = sphi 0, %s142
    $region4: #{tpu_custom_call.1} parent=1 // loop_header_branch
      %21 = sbr.rel (%p19) target = $region8
    $region5: #{tpu_custom_call.1} parent=1 // loop_body
      %s23 = ssub.s32 %s18, 1
      %s24 = ssub.s32 %s18, 2
      %s25 = sadd.s32 %s18, 1
      %s26 = ssub.s32 %s18, %s25
      %p27 = scmp.eq.s32.totalorder %s26, 0
      %s29 = sadd.s32 %s28, 1
      %s30 = scalar_select %p27, %s28, %s29
      %p33 = pneg %p27
      %p34 = scmp.eq.s32.totalorder %s18, 1
      %p35 = por %p33, %p34
      %p36 = scmp.ne.s32.totalorder %s28, %s31
      %p37 = scmp.eq.s32.totalorder %s18, 0
      %p38 = por %p36, %p37
      %p39 = scmp.ne.s32.totalorder %s28, %s31
      %p40 = scmp.eq.s32.totalorder %s23, 1
      %p41 = por %p39, %p40
      %p42 = scmp.ne.s32.totalorder %s31, %s32
      %p43 = scmp.eq.s32.totalorder %s23, 0
      %p44 = por %p42, %p43
      %p45 = scmp.ne.s32.totalorder %s31, %s32
      %p46 = scmp.eq.s32.totalorder %s24, 1
      %p47 = por %p45, %p46
      %p49 = scmp.ne.s32.totalorder %s32, %s48
      %p50 = scmp.eq.s32.totalorder %s24, 0
      %p51 = por %p49, %p50
      %s53 = sadd.s32 %s52, 1
      %p56 = scmp.eq.s32.totalorder %s18, 1
      %p57 = scmp.ne.s32.totalorder %s52, %s54
      %p58 = scmp.eq.s32.totalorder %s18, 0
      %p59 = por %p57, %p58
      %p60 = scmp.ne.s32.totalorder %s52, %s54
      %p61 = scmp.eq.s32.totalorder %s23, 1
      %p62 = por %p60, %p61
      %p63 = scmp.ne.s32.totalorder %s54, %s55
      %p64 = scmp.eq.s32.totalorder %s23, 0
      %p65 = por %p63, %p64
      %p66 = scmp.ne.s32.totalorder %s54, %s55
      %p67 = scmp.eq.s32.totalorder %s24, 1
      %p68 = por %p66, %p67
      %p70 = scmp.ne.s32.totalorder %s55, %s69
      %p71 = scmp.eq.s32.totalorder %s24, 0
      %p72 = por %p70, %p71
      %s74 = sadd.s32 %s73, 1
      %p77 = scmp.eq.s32.totalorder %s18, 1
      %p78 = scmp.ne.s32.totalorder %s73, %s75
      %p79 = scmp.eq.s32.totalorder %s18, 0
      %p80 = por %p78, %p79
      %p81 = scmp.ne.s32.totalorder %s73, %s75
      %p82 = scmp.eq.s32.totalorder %s23, 1
      %p83 = por %p81, %p82
      %p84 = scmp.ne.s32.totalorder %s75, %s76
      %p85 = scmp.eq.s32.totalorder %s23, 0
      %p86 = por %p84, %p85
      %p87 = scmp.ne.s32.totalorder %s75, %s76
      %p88 = scmp.eq.s32.totalorder %s24, 1
      %p89 = por %p87, %p88
      %p91 = scmp.ne.s32.totalorder %s76, %s90
      %p92 = scmp.eq.s32.totalorder %s24, 0
      %p93 = por %p91, %p92
      %s95 = sadd.s32 %s94, 1
      %p98 = scmp.eq.s32.totalorder %s18, 1
      %p99 = scmp.ne.s32.totalorder %s94, %s96
      %p100 = scmp.eq.s32.totalorder %s18, 0
      %p101 = por %p99, %p100
      %p102 = scmp.ne.s32.totalorder %s94, %s96
      %p103 = scmp.eq.s32.totalorder %s23, 1
      %p104 = por %p102, %p103
      %p105 = scmp.ne.s32.totalorder %s96, %s97
      %p106 = scmp.eq.s32.totalorder %s23, 0
      %p107 = por %p105, %p106
      %p108 = scmp.ne.s32.totalorder %s96, %s97
      %p109 = scmp.eq.s32.totalorder %s24, 1
      %p110 = por %p108, %p109
      %p112 = scmp.ne.s32.totalorder %s97, %s111
      %p113 = scmp.eq.s32.totalorder %s24, 0
      %p114 = por %p112, %p113
      %s116 = sadd.s32 %s115, 1
      %p119 = scmp.eq.s32.totalorder %s18, 1
      %p120 = scmp.ne.s32.totalorder %s115, %s117
      %p121 = scmp.eq.s32.totalorder %s18, 0
      %p122 = por %p120, %p121
      %p123 = scmp.ne.s32.totalorder %s115, %s117
      %p124 = scmp.eq.s32.totalorder %s23, 1
      %p125 = por %p123, %p124
      %p126 = scmp.ne.s32.totalorder %s117, %s118
      %p127 = scmp.eq.s32.totalorder %s23, 0
      %p128 = por %p126, %p127
      %p129 = scmp.ne.s32.totalorder %s117, %s118
      %p130 = scmp.eq.s32.totalorder %s24, 1
      %p131 = por %p129, %p130
      %p133 = scmp.ne.s32.totalorder %s118, %s132
      %p134 = scmp.eq.s32.totalorder %s24, 0
      %p135 = por %p133, %p134
      %s136 = ssub.s32 %s18, %s25
      %p137 = scmp.eq.s32.totalorder %s136, 0
      %s139 = sadd.s32 %s138, 1
      %s140 = scalar_select %p137, %s138, %s139
      %p143 = pneg %p137
      %p144 = scmp.eq.s32.totalorder %s18, 1
      %p145 = por %p143, %p144
      %p146 = scmp.ne.s32.totalorder %s138, %s141
      %p147 = scmp.eq.s32.totalorder %s18, 0
      %p148 = por %p146, %p147
      %p149 = scmp.ne.s32.totalorder %s138, %s141
      %p150 = scmp.eq.s32.totalorder %s23, 1
      %p151 = por %p149, %p150
      %p152 = scmp.ne.s32.totalorder %s141, %s142
      %p153 = scmp.eq.s32.totalorder %s23, 0
      %p154 = por %p152, %p153
      %p155 = scmp.ne.s32.totalorder %s141, %s142
      %p156 = scmp.eq.s32.totalorder %s24, 1
      %p157 = por %p155, %p156
      %p159 = scmp.ne.s32.totalorder %s142, %s158
      %p160 = scmp.eq.s32.totalorder %s24, 0
      %p161 = por %p159, %p160
      %p162 = scmp.le.s32.totalorder 1, %s18
      %p163 = scmp.lt.s32.totalorder %s18, 3
      %p164 = pnand %p162, %p163
      %p165 = pneg %p164
      // Predicated region
      $region9: #{tpu_custom_call.1} parent=5 // pred_check
        _
      $region10: #{tpu_custom_call.1} parent=5 // pred_check_branch
        %167 = sbr.rel (%p164) target = $region12
      $region11: #{tpu_custom_call.1} parent=5 // pred_region
        %s168 = ssub.s32 %s18, 1
        // Predicated region
        $region13: #{tpu_custom_call.1} parent=11 // pred_check
          %p169 = pneg %p65
        $region14: #{tpu_custom_call.1} parent=11 // pred_check_branch
          %171 = sbr.rel (%p169) target = $region16
        $region15: #{tpu_custom_call.1} parent=11 // pred_region
          %s173 = ssub.s32 3072, 3072
          %174 = vsyncadd [#allocation8], %s173
          %s175 = sshll.u32 [#allocation7], 4
          %s176 = int_to_ptr.vmem [resolvable:$true] %s175
          %181 = dma.hbm_to_vmem [thread:$0]  %s1, 3072, %s176, [#allocation8], 64, 64, 4
        $region16: #{tpu_custom_call.1} parent=11 // pred_fallthru
          _
        // Predicated region
        $region17: #{tpu_custom_call.1} parent=11 // pred_check
          %p182 = pneg %p86
        $region18: #{tpu_custom_call.1} parent=11 // pred_check_branch
          %184 = sbr.rel (%p182) target = $region20
        $region19: #{tpu_custom_call.1} parent=11 // pred_region
          _
        $region20: #{tpu_custom_call.1} parent=11 // pred_fallthru
          _
        // Predicated region
        $region21: #{tpu_custom_call.1} parent=11 // pred_check
          %p185 = pneg %p107
        $region22: #{tpu_custom_call.1} parent=11 // pred_check_branch
          %187 = sbr.rel (%p185) target = $region24
        $region23: #{tpu_custom_call.1} parent=11 // pred_region
          _
        $region24: #{tpu_custom_call.1} parent=11 // pred_fallthru
          _
        // Predicated region
        $region25: #{tpu_custom_call.1} parent=11 // pred_check
          %p188 = pneg %p128
        $region26: #{tpu_custom_call.1} parent=11 // pred_check_branch
          %190 = sbr.rel (%p188) target = $region28
        $region27: #{tpu_custom_call.1} parent=11 // pred_region
          _
        $region28: #{tpu_custom_call.1} parent=11 // pred_fallthru
          _
      $region12: #{tpu_custom_call.1} parent=5 // pred_fallthru
        _
      %p191 = scmp.lt.s32.totalorder %s18, 2
      // Predicated region
      $region29: #{tpu_custom_call.1} parent=5 // pred_check
        %p192 = pneg %p191
      $region30: #{tpu_custom_call.1} parent=5 // pred_check_branch
        %194 = sbr.rel (%p192) target = $region32
      $region31: #{tpu_custom_call.1} parent=5 // pred_region
        // Predicated region
        $region33: #{tpu_custom_call.1} parent=31 // pred_check
          %p195 = pneg %p38
        $region34: #{tpu_custom_call.1} parent=31 // pred_check_branch
          %197 = sbr.rel (%p195) target = $region36
        $region35: #{tpu_custom_call.1} parent=31 // pred_region
          %s198 = sand.u32 %s28, 1
          %s199 = scalar_lea.sflag [#allocation5], %s198
          %s200 = sand.u32 %s28, 1
          %s201 = smul.addr %s200, 16
          %s202 = scalar_lea.vmem [#allocation4], %s201
          %s204 = ssub.s32 256, 256
          %205 = vsyncadd %s199, %s204
          %s206 = smul.addr %s18, 2
          %s207 = smul.addr %s206, 128
          %s208 = scalar_lea.hbm %s0, %s207
          %s209 = sshll.u32 %s202, 4
          %s210 = int_to_ptr.vmem [resolvable:$true] %s209
          %215 = dma.hbm_to_vmem [thread:$0]  %s208, 256, %s210, %s199, 128, 128, 8
        $region36: #{tpu_custom_call.1} parent=31 // pred_fallthru
          _
      $region32: #{tpu_custom_call.1} parent=5 // pred_fallthru
        _
      %p216 = scmp.le.s32.totalorder 1, %s18
      %p217 = scmp.lt.s32.totalorder %s18, 3
      %p218 = pnand %p216, %p217
      %p219 = pneg %p218
      // Predicated region
      $region37: #{tpu_custom_call.1} parent=5 // pred_check
        _
      $region38: #{tpu_custom_call.1} parent=5 // pred_check_branch
        %221 = sbr.rel (%p218) target = $region40
      $region39: #{tpu_custom_call.1} parent=5 // pred_region
        %s222 = ssub.s32 %s18, 1
        %s223 = sand.u32 %s31, 1
        %s224 = scalar_lea.sflag [#allocation5], %s223
        %s225 = sand.u32 %s31, 1
        %s226 = smul.addr %s225, 16
        %s227 = scalar_lea.vmem [#allocation4], %s226
        // Predicated region
        $region41: #{tpu_custom_call.1} parent=39 // pred_check
          %p228 = pneg %p44
        $region42: #{tpu_custom_call.1} parent=39 // pred_check_branch
          %230 = sbr.rel (%p228) target = $region44
        $region43: #{tpu_custom_call.1} parent=39 // pred_region
          %231 = dma.done %s224, 256
        $region44: #{tpu_custom_call.1} parent=39 // pred_fallthru
          _
        // Predicated region
        $region45: #{tpu_custom_call.1} parent=39 // pred_check
          %p232 = pneg %p65
        $region46: #{tpu_custom_call.1} parent=39 // pred_check_branch
          %234 = sbr.rel (%p232) target = $region48
        $region47: #{tpu_custom_call.1} parent=39 // pred_region
          %235 = dma.done [#allocation8], 3072
        $region48: #{tpu_custom_call.1} parent=39 // pred_fallthru
          _
        %s236 = sand.u32 %s31, 1
        %s237 = scalar_lea.sflag [#allocation5], %s236
        %s238 = sand.u32 %s31, 1
        %s239 = smul.addr %s238, 16
        %s240 = scalar_lea.vmem [#allocation4], %s239
        %p241 = pneg %p44
        %p242 = pneg %p41
        %p243 = pneg %p65
        %p244 = pneg %p62
        %p245 = pneg %p86
        %p246 = pneg %p83
        %p247 = pneg %p107
        %p248 = pneg %p104
        %p249 = pneg %p128
        %p250 = pneg %p125
        %p251 = pneg %p154
        %p252 = pneg %p151
        %s253 = sand.u32 %s141, 1
        %s254 = scalar_lea.sflag [#allocation6], %s253
        %s255 = sand.u32 %s141, 1
        %s256 = smul.addr %s255, 16
        %s257 = scalar_lea.vmem [#allocation9], %s256
        %vm259 = vcmask 1043459
        %vm260 = vsmask.f32 7950
        %vm261 = vmand %vm259, %vm260
        %v262 = vld [vmem:[#allocation2] sm:$0x8]
        %v263 = vsel %vm261, 0, %v262
        %264 = vst [vmem:[#allocation2] sm:$0x8] %v263
        %vm265 = vcmask 1044484
        %vm266 = vsmask.f32 4352
        %vm267 = vmand %vm265, %vm266
        %v268 = vld [vmem:[#allocation2 + $0x8] sm:$0x10]
        %v269 = vsel %vm267, 0, %v268
        %270 = vst [vmem:[#allocation2 + $0x8] sm:$0x10] %v269
        %v271 = vld [vmem:[#allocation3] sm:$0x8]
        %v272 = vsel %vm261, 0, %v271
        %273 = vst [vmem:[#allocation3] sm:$0x8] %v272
        %v274 = vld [vmem:[#allocation3 + $0x8] sm:$0x10]
        %v275 = vsel %vm267, 0, %v274
        %276 = vst [vmem:[#allocation3 + $0x8] sm:$0x10] %v275
        %v277 = vld [vmem:[%s227] sm:$0xff]
        %v278 = vld [vmem:[%s227 + $0x8] sm:$0xff]
        %v279 = vpack.c.bf16 %v278, %v277
        %v281 = vrot.slane %v279, 4
        %283 = vst [vmem:[#allocation2] sm:$0xf0] %v281
        %284 = vst [vmem:[#allocation2 + $0x8] sm:$0xf] %v281
        %v285 = vld [vmem:[#allocation2] sm:$0xf0]
        %v286 = vld [vmem:[#allocation2 + $0x8] sm:$0xf]
        %s287 = scalar_lea.vmem [#allocation7], 64
        %v288 = vld [vmem:[%s287] sm:$0xf]
        %v289 = vld [vmem:[%s287 + $0x4] sm:$0xf]
        %v290 = vld [vmem:[%s287 + $0x8] sm:$0xf]
        %v291 = vld [vmem:[%s287 + $0xc] sm:$0xf]
        %v292 = vld [vmem:[%s287 + $0x10] sm:$0xf]
        %v293 = vld [vmem:[%s287 + $0x14] sm:$0xf]
        %v294 = vld [vmem:[%s287 + $0x18] sm:$0xf]
        %v295 = vld [vmem:[%s287 + $0x1c] sm:$0xf]
        %v296 = vld [vmem:[%s287 + $0x20] sm:$0xf]
        %v297 = vld [vmem:[%s287 + $0x24] sm:$0xf]
        %v298 = vld [vmem:[%s287 + $0x28] sm:$0xf]
        %v299 = vld [vmem:[%s287 + $0x2c] sm:$0xf]
        %v300 = vld [vmem:[%s287 + $0x30] sm:$0xf]
        %v301 = vld [vmem:[%s287 + $0x34] sm:$0xf]
        %v302 = vld [vmem:[%s287 + $0x38] sm:$0xf]
        %v303 = vld [vmem:[%s287 + $0x3c] sm:$0xf]
        %v304 = vld [vmem:[#allocation2] sm:$0xf8]
        %v305 = vld [vmem:[#allocation7] sm:$0xf]
        %v306 = vld [vmem:[#allocation7 + $0x4] sm:$0xf]
        %v307 = vld [vmem:[#allocation7 + $0x8] sm:$0xf]
        %v308 = vld [vmem:[#allocation7 + $0xc] sm:$0xf]
        %v309 = vld [vmem:[#allocation7 + $0x10] sm:$0xf]
        %v310 = vld [vmem:[#allocation7 + $0x14] sm:$0xf]
        %v311 = vld [vmem:[#allocation7 + $0x18] sm:$0xf]
        %v312 = vld [vmem:[#allocation7 + $0x1c] sm:$0xf]
        %v313 = vld [vmem:[#allocation7 + $0x20] sm:$0xf]
        %v314 = vld [vmem:[#allocation7 + $0x24] sm:$0xf]
        %v315 = vld [vmem:[#allocation7 + $0x28] sm:$0xf]
        %v316 = vld [vmem:[#allocation7 + $0x2c] sm:$0xf]
        %v317 = vld [vmem:[#allocation7 + $0x30] sm:$0xf]
        %v318 = vld [vmem:[#allocation7 + $0x34] sm:$0xf]
        %v319 = vld [vmem:[#allocation7 + $0x38] sm:$0xf]
        %v320 = vld [vmem:[#allocation7 + $0x3c] sm:$0xf]
        %v322 = vshrl.u32 %v304, 16
        %v324 = vrot.slane %v322, 3
        %v325 = vshll.u32 %v304, 16
        %v327 = vrot.slane %v325, 4
        %v328 = vor.u32 %v324, %v327
        %v330 = vshrl.u32 %v286, 16
        %v332 = vrot.slane %v330, 3
        %v333 = vshll.u32 %v286, 16
        %v335 = vrot.slane %v333, 4
        %v336 = vor.u32 %v332, %v335
        %v337 = vsel %vm266, %v328, %v336
        %v355 = vunpack.c.l.b16 %v305
        %v356 = vunpack.c.l.b16 %v306
        %v357 = vunpack.c.l.b16 %v307
        %v358 = vunpack.c.l.b16 %v308
        %v359 = vunpack.c.l.b16 %v309
        %v360 = vunpack.c.l.b16 %v310
        %v361 = vunpack.c.l.b16 %v311
        %v362 = vunpack.c.l.b16 %v312
        %v363 = vunpack.c.l.b16 %v313
        %v364 = vunpack.c.l.b16 %v314
        %v365 = vunpack.c.l.b16 %v315
        %v366 = vunpack.c.l.b16 %v316
        %v367 = vunpack.c.l.b16 %v317
        %v368 = vunpack.c.l.b16 %v318
        %v369 = vunpack.c.l.b16 %v319
        %v370 = vunpack.c.l.b16 %v320
        %v371 = vpack.c.b16 %v356, %v355
        %v372 = vpack.c.b16 %v358, %v357
        %v373 = vpack.c.b16 %v360, %v359
        %v374 = vpack.c.b16 %v362, %v361
        %v375 = vpack.c.b16 %v364, %v363
        %v376 = vpack.c.b16 %v366, %v365
        %v377 = vpack.c.b16 %v368, %v367
        %v378 = vpack.c.b16 %v370, %v369
        %387 = vmatprep.subr.bf16.mxu0 0
        %388 = vmatpush1.bf16.msra.mxu0 %v371
        %389 = vmatprep.subr.bf16.mxu0 0
        %390 = vmatpush1.bf16.msra.mxu0 %v372
        %391 = vmatprep.subr.bf16.mxu0 0
        %392 = vmatpush1.bf16.msra.mxu0 %v373
        %393 = vmatprep.subr.bf16.mxu0 0
        %394 = vmatpush1.bf16.msra.mxu0 %v374
        %395 = vmatprep.subr.bf16.mxu0 0
        %396 = vmatpush1.bf16.msra.mxu0 %v375
        %397 = vmatprep.subr.bf16.mxu0 0
        %398 = vmatpush1.bf16.msra.mxu0 %v376
        %399 = vmatprep.subr.bf16.mxu0 0
        %400 = vmatpush1.bf16.msra.mxu0 %v377
        %401 = vmatprep.subr.bf16.mxu0 0
        %402 = vmatpush1.bf16.msra.mxu0 %v378
        %403 = vmatprep.subr.bf16.mxu0 0
        %404 = vmatpush1.bf16.msra.mxu0 0
        %405 = vmatprep.subr.bf16.mxu0 0
        %406 = vmatpush1.bf16.msra.mxu0 0
        %407 = vmatprep.subr.bf16.mxu0 0
        %408 = vmatpush1.bf16.msra.mxu0 0
        %409 = vmatprep.subr.bf16.mxu0 0
        %410 = vmatpush1.bf16.msra.mxu0 0
        %411 = vmatprep.subr.bf16.mxu0 0
        %412 = vmatpush1.bf16.msra.mxu0 0
        %413 = vmatprep.subr.bf16.mxu0 0
        %414 = vmatpush1.bf16.msra.mxu0 0
        %415 = vmatprep.subr.bf16.mxu0 0
        %416 = vmatpush1.bf16.msra.mxu0 0
        %417 = vmatprep.subr.bf16.mxu0 0
        %418 = vmatpush1.bf16.msra.mxu0 0
        %419 = vmatprep.mubr.bf16.mxu0 0
        %420 = vmatmul.mubr.bf16.gmra.mrb[0].mxu0 %v337
        %v421 = vpop.f32.mrb[0].mxu0
        %v422 = vadd.f32 0.0, %v421
        %v423 = vpop.f32.mrb[0].mxu0
        %v424 = vpop.f32.mrb[0].mxu0
        %v425 = vadd.f32 0.0, %v424
        %v426 = vpop.f32.mrb[0].mxu0
        %427 = vdwg.mxu0
        %vm430 = vcmask 1043456
        %v431 = vrot.slane %v285, 4
        %v432 = vrot.slane %v286, 4
        %v433 = vsel %vm430, %v431, %v432
        %v451 = vunpack.c.l.b16 %v288
        %v452 = vunpack.c.l.b16 %v289
        %v453 = vunpack.c.l.b16 %v290
        %v454 = vunpack.c.l.b16 %v291
        %v455 = vunpack.c.l.b16 %v292
        %v456 = vunpack.c.l.b16 %v293
        %v457 = vunpack.c.l.b16 %v294
        %v458 = vunpack.c.l.b16 %v295
        %v459 = vunpack.c.l.b16 %v296
        %v460 = vunpack.c.l.b16 %v297
        %v461 = vunpack.c.l.b16 %v298
        %v462 = vunpack.c.l.b16 %v299
        %v463 = vunpack.c.l.b16 %v300
        %v464 = vunpack.c.l.b16 %v301
        %v465 = vunpack.c.l.b16 %v302
        %v466 = vunpack.c.l.b16 %v303
        %v467 = vpack.c.b16 %v452, %v451
        %v468 = vpack.c.b16 %v454, %v453
        %v469 = vpack.c.b16 %v456, %v455
        %v470 = vpack.c.b16 %v458, %v457
        %v471 = vpack.c.b16 %v460, %v459
        %v472 = vpack.c.b16 %v462, %v461
        %v473 = vpack.c.b16 %v464, %v463
        %v474 = vpack.c.b16 %v466, %v465
        %483 = vmatprep.subr.bf16.mxu0 0
        %484 = vmatpush1.bf16.msra.mxu0 %v467
        %485 = vmatprep.subr.bf16.mxu0 0
        %486 = vmatpush1.bf16.msra.mxu0 %v468
        %487 = vmatprep.subr.bf16.mxu0 0
        %488 = vmatpush1.bf16.msra.mxu0 %v469
        %489 = vmatprep.subr.bf16.mxu0 0
        %490 = vmatpush1.bf16.msra.mxu0 %v470
        %491 = vmatprep.subr.bf16.mxu0 0
        %492 = vmatpush1.bf16.msra.mxu0 %v471
        %493 = vmatprep.subr.bf16.mxu0 0
        %494 = vmatpush1.bf16.msra.mxu0 %v472
        %495 = vmatprep.subr.bf16.mxu0 0
        %496 = vmatpush1.bf16.msra.mxu0 %v473
        %497 = vmatprep.subr.bf16.mxu0 0
        %498 = vmatpush1.bf16.msra.mxu0 %v474
        %499 = vmatprep.subr.bf16.mxu0 0
        %500 = vmatpush1.bf16.msra.mxu0 0
        %501 = vmatprep.subr.bf16.mxu0 0
        %502 = vmatpush1.bf16.msra.mxu0 0
        %503 = vmatprep.subr.bf16.mxu0 0
        %504 = vmatpush1.bf16.msra.mxu0 0
        %505 = vmatprep.subr.bf16.mxu0 0
        %506 = vmatpush1.bf16.msra.mxu0 0
        %507 = vmatprep.subr.bf16.mxu0 0
        %508 = vmatpush1.bf16.msra.mxu0 0
        %509 = vmatprep.subr.bf16.mxu0 0
        %510 = vmatpush1.bf16.msra.mxu0 0
        %511 = vmatprep.subr.bf16.mxu0 0
        %512 = vmatpush1.bf16.msra.mxu0 0
        %513 = vmatprep.subr.bf16.mxu0 0
        %514 = vmatpush1.bf16.msra.mxu0 0
        %515 = vmatprep.mubr.bf16.mxu0 0
        %516 = vmatmul.mubr.bf16.gmra.mrb[0].mxu0 %v433
        %v517 = vpop.f32.mrb[0].mxu0
        %v518 = vadd.f32 %v422, %v517
        %v519 = vpop.f32.mrb[0].mxu0
        %v520 = vpop.f32.mrb[0].mxu0
        %v521 = vadd.f32 %v425, %v520
        %v522 = vpop.f32.mrb[0].mxu0
        %523 = vdwg.mxu0
        %v524 = vld [vmem:[#allocation2 + $0x8] sm:$0x1f]
        %s525 = scalar_lea.vmem [#allocation7], 128
        %v526 = vld [vmem:[%s525] sm:$0xf]
        %v527 = vld [vmem:[%s525 + $0x4] sm:$0xf]
        %v528 = vld [vmem:[%s525 + $0x8] sm:$0xf]
        %v529 = vld [vmem:[%s525 + $0xc] sm:$0xf]
        %v530 = vld [vmem:[%s525 + $0x10] sm:$0xf]
        %v531 = vld [vmem:[%s525 + $0x14] sm:$0xf]
        %v532 = vld [vmem:[%s525 + $0x18] sm:$0xf]
        %v533 = vld [vmem:[%s525 + $0x1c] sm:$0xf]
        %v534 = vld [vmem:[%s525 + $0x20] sm:$0xf]
        %v535 = vld [vmem:[%s525 + $0x24] sm:$0xf]
        %v536 = vld [vmem:[%s525 + $0x28] sm:$0xf]
        %v537 = vld [vmem:[%s525 + $0x2c] sm:$0xf]
        %v538 = vld [vmem:[%s525 + $0x30] sm:$0xf]
        %v539 = vld [vmem:[%s525 + $0x34] sm:$0xf]
        %v540 = vld [vmem:[%s525 + $0x38] sm:$0xf]
        %v541 = vld [vmem:[%s525 + $0x3c] sm:$0xf]
        %vm542 = vsmask.f32 3328
        %v544 = vshrl.u32 %v285, 16
        %v546 = vrot.slane %v544, 4
        %v547 = vshll.u32 %v285, 16
        %v549 = vrot.slane %v547, 5
        %v550 = vor.u32 %v546, %v549
        %v552 = vshrl.u32 %v524, 16
        %v554 = vrot.slane %v552, 4
        %v555 = vshll.u32 %v524, 16
        %v557 = vrot.slane %v555, 5
        %v558 = vor.u32 %v554, %v557
        %v559 = vsel %vm542, %v550, %v558
        %v577 = vunpack.c.l.b16 %v526
        %v578 = vunpack.c.l.b16 %v527
        %v579 = vunpack.c.l.b16 %v528
        %v580 = vunpack.c.l.b16 %v529
        %v581 = vunpack.c.l.b16 %v530
        %v582 = vunpack.c.l.b16 %v531
        %v583 = vunpack.c.l.b16 %v532
        %v584 = vunpack.c.l.b16 %v533
        %v585 = vunpack.c.l.b16 %v534
        %v586 = vunpack.c.l.b16 %v535
        %v587 = vunpack.c.l.b16 %v536
        %v588 = vunpack.c.l.b16 %v537
        %v589 = vunpack.c.l.b16 %v538
        %v590 = vunpack.c.l.b16 %v539
        %v591 = vunpack.c.l.b16 %v540
        %v592 = vunpack.c.l.b16 %v541
        %v593 = vpack.c.b16 %v578, %v577
        %v594 = vpack.c.b16 %v580, %v579
        %v595 = vpack.c.b16 %v582, %v581
        %v596 = vpack.c.b16 %v584, %v583
        %v597 = vpack.c.b16 %v586, %v585
        %v598 = vpack.c.b16 %v588, %v587
        %v599 = vpack.c.b16 %v590, %v589
        %v600 = vpack.c.b16 %v592, %v591
        %609 = vmatprep.subr.bf16.mxu0 0
        %610 = vmatpush1.bf16.msra.mxu0 %v593
        %611 = vmatprep.subr.bf16.mxu0 0
        %612 = vmatpush1.bf16.msra.mxu0 %v594
        %613 = vmatprep.subr.bf16.mxu0 0
        %614 = vmatpush1.bf16.msra.mxu0 %v595
        %615 = vmatprep.subr.bf16.mxu0 0
        %616 = vmatpush1.bf16.msra.mxu0 %v596
        %617 = vmatprep.subr.bf16.mxu0 0
        %618 = vmatpush1.bf16.msra.mxu0 %v597
        %619 = vmatprep.subr.bf16.mxu0 0
        %620 = vmatpush1.bf16.msra.mxu0 %v598
        %621 = vmatprep.subr.bf16.mxu0 0
        %622 = vmatpush1.bf16.msra.mxu0 %v599
        %623 = vmatprep.subr.bf16.mxu0 0
        %624 = vmatpush1.bf16.msra.mxu0 %v600
        %625 = vmatprep.subr.bf16.mxu0 0
        %626 = vmatpush1.bf16.msra.mxu0 0
        %627 = vmatprep.subr.bf16.mxu0 0
        %628 = vmatpush1.bf16.msra.mxu0 0
        %629 = vmatprep.subr.bf16.mxu0 0
        %630 = vmatpush1.bf16.msra.mxu0 0
        %631 = vmatprep.subr.bf16.mxu0 0
        %632 = vmatpush1.bf16.msra.mxu0 0
        %633 = vmatprep.subr.bf16.mxu0 0
        %634 = vmatpush1.bf16.msra.mxu0 0
        %635 = vmatprep.subr.bf16.mxu0 0
        %636 = vmatpush1.bf16.msra.mxu0 0
        %637 = vmatprep.subr.bf16.mxu0 0
        %638 = vmatpush1.bf16.msra.mxu0 0
        %639 = vmatprep.subr.bf16.mxu0 0
        %640 = vmatpush1.bf16.msra.mxu0 0
        %641 = vmatprep.mubr.bf16.mxu0 0
        %642 = vmatmul.mubr.bf16.gmra.mrb[0].mxu0 %v559
        %v643 = vpop.f32.mrb[0].mxu0
        %v644 = vadd.f32 0.0, %v643
        %v645 = vpop.f32.mrb[0].mxu0
        %v646 = vpop.f32.mrb[0].mxu0
        %v647 = vadd.f32 0.0, %v646
        %v648 = vpop.f32.mrb[0].mxu0
        %649 = vdwg.mxu0
        %v650 = vadd.f32 %v518, %v644
        %v651 = vadd.f32 %v521, %v647
        %v652 = vld [vmem:[%s2] sm:$0x1]
        %v654 = vlaneseq
        %v655 = vshrl.u32 %v654, 7
        %v656 = vsub.s32 0, %v655
        %v657 = vrot.slane %v652, %v656
        %v659 = vadd.f32 %v650, %v657
        %v660 = vadd.f32 %v651, %v657
        %v661 = vmax.f32 %v659, 0.0
        %v662 = vmax.f32 %v660, 0.0
        %v663 = vld [vmem:[%s3] sm:$0x1]
        %v665 = vlaneseq
        %v666 = vshrl.u32 %v665, 7
        %v667 = vsub.s32 0, %v666
        %v668 = vrot.slane %v663, %v667
        %v670 = vmul.f32 %v661, %v668
        %v671 = vmul.f32 %v662, %v668
        %v672 = vld [vmem:[%s4] sm:$0x1]
        %v674 = vlaneseq
        %v675 = vshrl.u32 %v674, 7
        %v676 = vsub.s32 0, %v675
        %v677 = vrot.slane %v672, %v676
        %v679 = vadd.f32 %v670, %v677
        %v680 = vadd.f32 %v671, %v677
        %681 = vst [vmem:[%s257] sm:$0xff] %v679
        %682 = vst [vmem:[%s257 + $0x8] sm:$0xff] %v680
        %s683 = sand.u32 %s141, 1
        %s684 = scalar_lea.sflag [#allocation6], %s683
        %s685 = sand.u32 %s141, 1
        %s686 = smul.addr %s685, 16
        %s687 = scalar_lea.vmem [#allocation9], %s686
        // Predicated region
        $region49: #{tpu_custom_call.1} parent=39 // pred_check
          %p688 = pneg %p151
        $region50: #{tpu_custom_call.1} parent=39 // pred_check_branch
          %690 = sbr.rel (%p688) target = $region52
        $region51: #{tpu_custom_call.1} parent=39 // pred_region
          %s692 = ssub.s32 256, 256
          %693 = vsyncadd %s684, %s692
          %s694 = smul.addr %s23, 2
          %s695 = smul.addr %s694, 128
          %s696 = scalar_lea.hbm %s5, %s695
          %s697 = sshll.u32 %s687, 4
          %s698 = int_to_ptr.vmem [resolvable:$true] %s697
          %703 = dma.vmem_to_hbm [thread:$0]  %s698, 256, %s696, %s684, 128, 128, 8
        $region52: #{tpu_custom_call.1} parent=39 // pred_fallthru
          _
      $region40: #{tpu_custom_call.1} parent=5 // pred_fallthru
        _
      %p704 = scmp.le.s32.totalorder 2, %s18
      // Predicated region
      $region53: #{tpu_custom_call.1} parent=5 // pred_check
        %p705 = pneg %p704
      $region54: #{tpu_custom_call.1} parent=5 // pred_check_branch
        %707 = sbr.rel (%p705) target = $region56
      $region55: #{tpu_custom_call.1} parent=5 // pred_region
        %s708 = ssub.s32 %s18, 2
        // Predicated region
        $region57: #{tpu_custom_call.1} parent=55 // pred_check
          %p709 = pneg %p157
        $region58: #{tpu_custom_call.1} parent=55 // pred_check_branch
          %711 = sbr.rel (%p709) target = $region60
        $region59: #{tpu_custom_call.1} parent=55 // pred_region
          %s712 = sand.u32 %s142, 1
          %s713 = scalar_lea.sflag [#allocation6], %s712
          %s714 = sand.u32 %s142, 1
          %s715 = smul.addr %s714, 16
          %s716 = scalar_lea.vmem [#allocation9], %s715
          %717 = dma.done %s713, 256
        $region60: #{tpu_custom_call.1} parent=55 // pred_fallthru
          _
      $region56: #{tpu_custom_call.1} parent=5 // pred_fallthru
        _
    $region6: #{tpu_custom_call.1} parent=1 // loop_footer
      %s22 = sadd.s32 1, %s18
    $region7: #{tpu_custom_call.1} parent=1 // loop_footer_branch
      %17 = sbr.rel target = $region3
    $region8: #{tpu_custom_call.1} parent=1 // loop_exit
      _
    %718 = vsyncpa [#allocation5], 1
    %s719 = scalar_lea.sflag [#allocation5], 1
    %720 = vsyncpa %s719, 1
    %721 = vsyncpa [#allocation8], 1
    %722 = vsyncpa [#allocation6], 1
    %s723 = scalar_lea.sflag [#allocation6], 1
    %724 = vsyncpa %s723, 1

</llo_original>
